<compile_context>
chip_gen: v5e
topology: v5e:2x2
jax: 0.10.0
libtpu: 0.0.40
codegen_flags: <defaults>
</compile_context>

<pallas_src>
import functools

import numpy as np
import jax
import jax.numpy as jnp
from jax import lax
from jax.experimental import pallas as pl
from jax.experimental.pallas import tpu as pltpu

EPS = 1e-10
_NV_W = 9                # packed scalars per non-vertical segment
_V_W = 3                 # packed scalars per vertical segment
_STATIC_UNROLL_MAX = 8   # loops with <= this many iterations unroll in Python
_LOOP_UNROLL = 4         # manual unroll factor for long fori_loops


def _sketch_render_kernel(nv_ref, v_ref, out_ref, *,
                          n_nonvert, n_vert, row_tile, w_pad, fuzz, k):
    """nv_ref: SMEM (n_nonvert*_NV_W,) f32 flat table per non-vertical segment:
               [ay/den, ax/den, c/den, slope, intercept, xmin, xmax, ymin, ymax]
    v_ref:  SMEM (n_vert*_V_W,) f32 flat table per vertical segment:
               [x1, ymin, ymax]
    out_ref: VMEM (row_tile, w_pad) f32 rendered rows (lane/row padded)."""
    R, W = row_tile, w_pad
    row_off = (pl.program_id(0) * row_tile).astype(jnp.float32)
    xp = lax.broadcasted_iota(jnp.int32, (R, W), 1).astype(jnp.float32)   # column
    yp = lax.broadcasted_iota(jnp.int32, (R, W), 0).astype(jnp.float32) + row_off

    def dist_pow(d2):
        # reference: sqrt(d2) then **fuzz (d2 already includes +EPS)
        if fuzz == 2.0:
            return d2                       # (sqrt(d2))**2 == d2 exactly
        if fuzz == 1.0:
            return d2 * lax.rsqrt(d2)       # sqrt(d2); 1 EUP + 1 VALU
        return jnp.exp((0.5 * fuzz) * jnp.log(d2))

    def nonvert_dist(i):
        base = i * _NV_W
        ayn = nv_ref[base + 0]
        axn = nv_ref[base + 1]
        cn = nv_ref[base + 2]
        slope = nv_ref[base + 3]
        icpt = nv_ref[base + 4]
        xmin = nv_ref[base + 5]
        xmax = nv_ref[base + 6]
        ymin = nv_ref[base + 7]
        ymax = nv_ref[base + 8]
        # closest point on the (infinite) line, inv_den folded on host
        cx = ayn * yp + axn * xp + cn
        cy = slope * cx + icpt
        cx = jnp.clip(cx, xmin, xmax)
        cy = jnp.clip(cy, ymin, ymax)
        return dist_pow((cx - xp) ** 2 + (cy - yp) ** 2 + EPS)

    def vert_dist(i):
        base = i * _V_W
        x1 = v_ref[base + 0]
        ymin = v_ref[base + 1]
        ymax = v_ref[base + 2]
        cy = jnp.clip(yp, ymin, ymax)
        return dist_pow((x1 - xp) ** 2 + (cy - yp) ** 2 + EPS)

    def smin_update(carry, d):
        # online max-shifted reduction, single exp per segment:
        #   m_new = max(m, d)
        #   b_new = b*exp(-k*(m - m_new)) + exp(-k*(d - m_new))
        # one of the two exps is exp(0)=1, the other is exp(k*|d - m|).
        m, b = carry
        e = jnp.exp(k * jnp.abs(d - m))
        m_new = jnp.maximum(m, d)
        b_new = jnp.where(d > m, b * e + 1.0, b + e)
        return m_new, b_new

    def run_loop(carry, dist_fn, start, stop):
        count = stop - start
        if count <= 0:
            return carry
        if count <= _STATIC_UNROLL_MAX:
            for i in range(start, stop):
                carry = smin_update(carry, dist_fn(i))
            return carry
        # manually unrolled fori_loop body (carry stays in vregs across the
        # unrolled iterations; per-iter SMEM/VALU work overlaps the EUP chain)
        n_main = count // _LOOP_UNROLL

        def body(j, c):
            base = start + j * _LOOP_UNROLL
            for u in range(_LOOP_UNROLL):
                c = smin_update(c, dist_fn(base + u))
            return c

        carry = lax.fori_loop(0, n_main, body, carry)
        for i in range(start + n_main * _LOOP_UNROLL, stop):
            carry = smin_update(carry, dist_fn(i))
        return carry

    # Peel the first drawn segment to initialize (m, b) (b >= 1 afterwards, so
    # the where-form never hits 0*inf even when exp saturates like the ref).
    ones = jnp.ones((R, W), jnp.float32)
    if n_nonvert > 0:
        carry = (nonvert_dist(0), ones)
        carry = run_loop(carry, nonvert_dist, 1, n_nonvert)
        carry = run_loop(carry, vert_dist, 0, n_vert)
    else:
        carry = (vert_dist(0), ones)
        carry = run_loop(carry, vert_dist, 1, n_vert)

    m, b = carry
    out_ref[...] = (k * m - jnp.log(b)) * (1.0 / k)


def _choose_tiling(h):
    """Row padding / tiling: pad rows to a multiple of 16 so the parallel row
    grid always has >= 2 steps (keeps both v7x TensorCores busy); keep tiles
    large (the kernel is EUP bound, not VMEM/HBM bound)."""
    h_pad = ((h + 15) // 16) * 16
    row_tile = h_pad // 2
    grid_rows = 2
    while row_tile > 256 and row_tile % 16 == 0:
        row_tile //= 2
        grid_rows *= 2
    return h_pad, row_tile, grid_rows


@functools.lru_cache(maxsize=None)
def _build_renderer(n_nonvert, n_vert, imsize, fuzz, smoothness):
    """Compile (once per sketch topology / config) the Pallas renderer."""
    H = int(imsize)
    h_pad, row_tile, grid_rows = _choose_tiling(H)
    w_pad = max(128, ((H + 127) // 128) * 128)      # lane-dense tiles / stores

    kernel = functools.partial(
        _sketch_render_kernel,
        n_nonvert=n_nonvert, n_vert=n_vert,
        row_tile=row_tile, w_pad=w_pad,
        fuzz=float(fuzz), k=float(smoothness))

    call = pl.pallas_call(
        kernel,
        out_shape=jax.ShapeDtypeStruct((h_pad, w_pad), jnp.float32),
        grid=(grid_rows,),
        in_specs=[
            pl.BlockSpec(memory_space=pltpu.MemorySpace.SMEM),
            pl.BlockSpec(memory_space=pltpu.MemorySpace.SMEM),
        ],
        out_specs=pl.BlockSpec((row_tile, w_pad), lambda i: (i, 0)),
        compiler_params=pltpu.CompilerParams(
            dimension_semantics=("parallel",)),
    )

    @jax.jit
    def render(nv_tbl, v_tbl):
        full = call(nv_tbl, v_tbl)
        # slice off row/lane padding; torch.unsqueeze twice -> (1,1,H,W)
        return full[:H, :H][None, None, :, :]

    return render


def sketch_render_forward(x_params, y_params, pen_params,
                          imsize=224, fuzz=1.0, smoothness=8.0):
    """Forward pass of SketchRenderNet. Returns NCHW (1, 1, imsize, imsize) f32."""
    x = np.asarray(x_params, dtype=np.float32)
    y = np.asarray(y_params, dtype=np.float32)
    pen = np.asarray(pen_params, dtype=np.float32)

    x0, x1 = x[:-1], x[1:]
    y0, y1 = y[:-1], y[1:]
    p1 = pen[1:]

    # Only segments whose end pen state == 2 are drawn.  Vertical/non-vertical
    # split is done here (statically) so the kernel never evaluates the
    # degenerate non-vertical formula for vertical segments.
    # TODO(synk): for fully recompile-free topology changes, pad the tables to
    # a fixed max segment count and pass (n_nonvert, n_vert) via scalar
    # prefetch with dynamic fori_loop bounds; kept static here for maximal
    # unrolling, with per-topology compiles cached by _build_renderer.
    drawn = p1 == 2
    nonvert = (x1 != x0) & drawn
    vert = (x1 == x0) & drawn
    n_nonvert = int(nonvert.sum())
    n_vert = int(vert.sum())
    assert n_nonvert + n_vert > 0, "no drawable segments (all p1 != 2)"

    if n_nonvert > 0:
        nx0, ny0 = x0[nonvert], y0[nonvert]
        nx1, ny1 = x1[nonvert], y1[nonvert]
        dx = nx0 - nx1
        dy = ny0 - ny1
        cross = ny0 * nx1 - nx0 * ny1
        inv_den = 1.0 / (dx * dx + dy * dy + EPS)
        ayn = (nx1 - nx0) * (ny1 - ny0) * inv_den    # yp coeff (inv_den folded)
        axn = dx * dx * inv_den                      # xp coeff
        cn = (ny0 - ny1) * cross * inv_den           # constant term
        slope = (ny1 - ny0) / (nx1 - nx0 + EPS)
        icpt = cross / (nx1 - nx0 + EPS)
        nv_tbl = np.stack(
            [ayn, axn, cn, slope, icpt,
             np.minimum(nx0, nx1), np.maximum(nx0, nx1),
             np.minimum(ny0, ny1), np.maximum(ny0, ny1)],
            axis=1).astype(np.float32).reshape(-1)
    else:
        nv_tbl = np.zeros((_NV_W,), np.float32)      # dummy, never read

    if n_vert > 0:
        vx1 = x1[vert]
        vy0, vy1 = y0[vert], y1[vert]
        v_tbl = np.stack(
            [vx1, np.minimum(vy0, vy1), np.maximum(vy0, vy1)],
            axis=1).astype(np.float32).reshape(-1)
    else:
        v_tbl = np.zeros((_V_W,), np.float32)        # dummy, never read

    render = _build_renderer(n_nonvert, n_vert, int(imsize),
                             float(fuzz), float(smoothness))
    return render(jnp.asarray(nv_tbl), jnp.asarray(v_tbl))


def _numpy_reference(x, y, pen, imsize, fuzz, k):
    """Direct float64 transcription of the PyTorch reference (for checking)."""
    x = np.asarray(x, np.float64)
    y = np.asarray(y, np.float64)
    pen = np.asarray(pen, np.float64)
    eps = 1e-10
    x0, x1 = x[:-1], x[1:]
    y0, y1 = y[:-1], y[1:]
    p1 = pen[1:]
    cols = np.arange(imsize, dtype=np.float64)
    xp = np.broadcast_to(cols[None, :], (imsize, imsize))
    yp = np.broadcast_to(cols[:, None], (imsize, imsize))
    fields = []
    for i in range(len(x0)):
        if p1[i] != 2:
            continue
        if x1[i] == x0[i]:
            cx = np.full((imsize, imsize), x1[i])
            cy = np.array(yp)
        else:
            n = ((x1[i] - x0[i]) * yp * (y1[i] - y0[i])
                 + (y0[i] - y1[i]) * (y0[i] * x1[i] - x0[i] * y1[i])
                 + xp * (x0[i] - x1[i]) ** 2)
            d = (x0[i] - x1[i]) ** 2 + (y0[i] - y1[i]) ** 2
            cx = n / (d + eps)
            cy = ((y1[i] - y0[i]) / (x1[i] - x0[i] + eps) * cx
                  + (y0[i] * x1[i] - x0[i] * y1[i]) / (x1[i] - x0[i] + eps))
        cx = np.clip(cx, min(x0[i], x1[i]), max(x0[i], x1[i]))
        cy = np.clip(cy, min(y0[i], y1[i]), max(y0[i], y1[i]))
        dist = np.sqrt((cx - xp) ** 2 + (cy - yp) ** 2 + eps)
        fields.append(dist ** fuzz)
    A = np.stack(fields, 0)
    A_max = A.max(0)
    B = np.exp(-k * (A - A_max)).sum(0)
    out = (-np.log(B) + k * A_max) / k
    return out[None, None].astype(np.float32)


if __name__ == "__main__":
    key = jax.random.PRNGKey(0)
    imsize = 16
    n_points = 8

    kx, ky = jax.random.split(key)
    x_list = np.array(jax.random.uniform(kx, (n_points,),
                                         minval=0.0, maxval=imsize - 1.0),
                      dtype=np.float32)
    y_list = np.array(jax.random.uniform(ky, (n_points,),
                                         minval=0.0, maxval=imsize - 1.0),
                      dtype=np.float32)
    x_list[3] = x_list[2]        # force one vertical segment (x1 == x0 branch)
    pen_list = np.full((n_points,), 2.0, dtype=np.float32)
    pen_list[5] = 1.0            # drop one segment via the p1 == 2 filter

    # Module-default config (fuzz=1, smoothness=8), faithful to the reference
    # (which may saturate exp for far-apart segments, exactly like torch).
    out = sketch_render_forward(x_list, y_list, pen_list,
                                imsize=imsize, fuzz=1.0, smoothness=8.0)
    out = jax.block_until_ready(out)
    assert out.shape == (1, 1, imsize, imsize)
    assert out.dtype == jnp.float32

    # Numerical checks on non-saturating configs against a direct transcription
    # of the torch reference:
    #   fuzz=1.0 -> rsqrt path + single-exp online smooth-min
    #   fuzz=1.5 -> fused exp/log pow path
    for fz in (1.0, 1.5):
        got = sketch_render_forward(x_list, y_list, pen_list,
                                    imsize=imsize, fuzz=fz, smoothness=0.5)
        got = jax.block_until_ready(got)
        ref = _numpy_reference(x_list, y_list, pen_list,
                               imsize=imsize, fuzz=fz, k=0.5)
        np.testing.assert_allclose(np.asarray(got), ref, rtol=2e-2, atol=2e-2)

    print("KERNEL_OK")
</pallas_src>

<mosaic_0001>
module attributes {stable_mosaic.version = 11 : i64} {
  func.func @_sketch_render_kernel(%arg0: i32, %arg1: memref<45xf32, #tpu.memory_space<smem>>, %arg2: memref<3xf32, #tpu.memory_space<smem>>, %arg3: memref<8x128xf32, #tpu.memory_space<vmem>>) attributes {dimension_semantics = [#tpu.dimension_semantics<parallel>], iteration_bounds = array<i64: 2>, scalar_prefetch = 0 : i64, scratch_operands = 0 : i64, tpu.core_type = #tpu.core_type<tc>, window_params = [{transform_indices = @transform_0, window_bounds = array<i64: 45>}, {transform_indices = @transform_1, window_bounds = array<i64: 3>}, {transform_indices = @transform_2, window_bounds = array<i64: 8, 128>}]} {
    %c8_i32 = arith.constant 8 : i32
    %0 = arith.muli %arg0, %c8_i32 : i32
    %1 = arith.sitofp %0 : i32 to f32
    %2 = tpu.iota {dimensions = array<i32: 1>} : vector<8x128xi32>
    %3 = arith.sitofp %2 : vector<8x128xi32> to vector<8x128xf32>
    %4 = tpu.iota {dimensions = array<i32: 0>} : vector<8x128xi32>
    %5 = arith.sitofp %4 : vector<8x128xi32> to vector<8x128xf32>
    %6 = vector.broadcast %1 : f32 to vector<8x128xf32>
    %7 = arith.addf %5, %6 : vector<8x128xf32>
    %cst = arith.constant 1.000000e+00 : f32
    %8 = vector.broadcast %cst : f32 to vector<8x128xf32>
    %c0 = arith.constant 0 : index
    %9 = memref.load %arg1[%c0] : memref<45xf32, #tpu.memory_space<smem>>
    %c1 = arith.constant 1 : index
    %10 = memref.load %arg1[%c1] : memref<45xf32, #tpu.memory_space<smem>>
    %c2 = arith.constant 2 : index
    %11 = memref.load %arg1[%c2] : memref<45xf32, #tpu.memory_space<smem>>
    %c3 = arith.constant 3 : index
    %12 = memref.load %arg1[%c3] : memref<45xf32, #tpu.memory_space<smem>>
    %c4 = arith.constant 4 : index
    %13 = memref.load %arg1[%c4] : memref<45xf32, #tpu.memory_space<smem>>
    %c5 = arith.constant 5 : index
    %14 = memref.load %arg1[%c5] : memref<45xf32, #tpu.memory_space<smem>>
    %c6 = arith.constant 6 : index
    %15 = memref.load %arg1[%c6] : memref<45xf32, #tpu.memory_space<smem>>
    %c7 = arith.constant 7 : index
    %16 = memref.load %arg1[%c7] : memref<45xf32, #tpu.memory_space<smem>>
    %c8 = arith.constant 8 : index
    %17 = memref.load %arg1[%c8] : memref<45xf32, #tpu.memory_space<smem>>
    %18 = vector.broadcast %9 : f32 to vector<8x128xf32>
    %19 = arith.mulf %18, %7 : vector<8x128xf32>
    %20 = vector.broadcast %10 : f32 to vector<8x128xf32>
    %21 = arith.mulf %20, %3 : vector<8x128xf32>
    %22 = arith.addf %19, %21 : vector<8x128xf32>
    %23 = vector.broadcast %11 : f32 to vector<8x128xf32>
    %24 = arith.addf %22, %23 : vector<8x128xf32>
    %25 = vector.broadcast %12 : f32 to vector<8x128xf32>
    %26 = arith.mulf %25, %24 : vector<8x128xf32>
    %27 = vector.broadcast %13 : f32 to vector<8x128xf32>
    %28 = arith.addf %26, %27 : vector<8x128xf32>
    %29 = vector.broadcast %14 : f32 to vector<8x128xf32>
    %30 = arith.maximumf %29, %24 : vector<8x128xf32>
    %31 = vector.broadcast %15 : f32 to vector<8x128xf32>
    %32 = arith.minimumf %31, %30 : vector<8x128xf32>
    %33 = vector.broadcast %16 : f32 to vector<8x128xf32>
    %34 = arith.maximumf %33, %28 : vector<8x128xf32>
    %35 = vector.broadcast %17 : f32 to vector<8x128xf32>
    %36 = arith.minimumf %35, %34 : vector<8x128xf32>
    %37 = arith.subf %32, %3 : vector<8x128xf32>
    %38 = arith.mulf %37, %37 : vector<8x128xf32>
    %39 = arith.subf %36, %7 : vector<8x128xf32>
    %40 = arith.mulf %39, %39 : vector<8x128xf32>
    %41 = arith.addf %38, %40 : vector<8x128xf32>
    %cst_0 = arith.constant 1.000000e-10 : f32
    %42 = vector.broadcast %cst_0 : f32 to vector<8x128xf32>
    %43 = arith.addf %41, %42 : vector<8x128xf32>
    %44 = math.rsqrt %43 : vector<8x128xf32>
    %45 = arith.mulf %43, %44 : vector<8x128xf32>
    %c9 = arith.constant 9 : index
    %46 = memref.load %arg1[%c9] : memref<45xf32, #tpu.memory_space<smem>>
    %c10 = arith.constant 10 : index
    %47 = memref.load %arg1[%c10] : memref<45xf32, #tpu.memory_space<smem>>
    %c11 = arith.constant 11 : index
    %48 = memref.load %arg1[%c11] : memref<45xf32, #tpu.memory_space<smem>>
    %c12 = arith.constant 12 : index
    %49 = memref.load %arg1[%c12] : memref<45xf32, #tpu.memory_space<smem>>
    %c13 = arith.constant 13 : index
    %50 = memref.load %arg1[%c13] : memref<45xf32, #tpu.memory_space<smem>>
    %c14 = arith.constant 14 : index
    %51 = memref.load %arg1[%c14] : memref<45xf32, #tpu.memory_space<smem>>
    %c15 = arith.constant 15 : index
    %52 = memref.load %arg1[%c15] : memref<45xf32, #tpu.memory_space<smem>>
    %c16 = arith.constant 16 : index
    %53 = memref.load %arg1[%c16] : memref<45xf32, #tpu.memory_space<smem>>
    %c17 = arith.constant 17 : index
    %54 = memref.load %arg1[%c17] : memref<45xf32, #tpu.memory_space<smem>>
    %55 = vector.broadcast %46 : f32 to vector<8x128xf32>
    %56 = arith.mulf %55, %7 : vector<8x128xf32>
    %57 = vector.broadcast %47 : f32 to vector<8x128xf32>
    %58 = arith.mulf %57, %3 : vector<8x128xf32>
    %59 = arith.addf %56, %58 : vector<8x128xf32>
    %60 = vector.broadcast %48 : f32 to vector<8x128xf32>
    %61 = arith.addf %59, %60 : vector<8x128xf32>
    %62 = vector.broadcast %49 : f32 to vector<8x128xf32>
    %63 = arith.mulf %62, %61 : vector<8x128xf32>
    %64 = vector.broadcast %50 : f32 to vector<8x128xf32>
    %65 = arith.addf %63, %64 : vector<8x128xf32>
    %66 = vector.broadcast %51 : f32 to vector<8x128xf32>
    %67 = arith.maximumf %66, %61 : vector<8x128xf32>
    %68 = vector.broadcast %52 : f32 to vector<8x128xf32>
    %69 = arith.minimumf %68, %67 : vector<8x128xf32>
    %70 = vector.broadcast %53 : f32 to vector<8x128xf32>
    %71 = arith.maximumf %70, %65 : vector<8x128xf32>
    %72 = vector.broadcast %54 : f32 to vector<8x128xf32>
    %73 = arith.minimumf %72, %71 : vector<8x128xf32>
    %74 = arith.subf %69, %3 : vector<8x128xf32>
    %75 = arith.mulf %74, %74 : vector<8x128xf32>
    %76 = arith.subf %73, %7 : vector<8x128xf32>
    %77 = arith.mulf %76, %76 : vector<8x128xf32>
    %78 = arith.addf %75, %77 : vector<8x128xf32>
    %cst_1 = arith.constant 1.000000e-10 : f32
    %79 = vector.broadcast %cst_1 : f32 to vector<8x128xf32>
    %80 = arith.addf %78, %79 : vector<8x128xf32>
    %81 = math.rsqrt %80 : vector<8x128xf32>
    %82 = arith.mulf %80, %81 : vector<8x128xf32>
    %83 = arith.subf %82, %45 : vector<8x128xf32>
    %84 = math.absf %83 : vector<8x128xf32>
    %cst_2 = arith.constant 8.000000e+00 : f32
    %85 = vector.broadcast %cst_2 : f32 to vector<8x128xf32>
    %86 = arith.mulf %85, %84 : vector<8x128xf32>
    %87 = math.exp %86 : vector<8x128xf32>
    %88 = arith.maximumf %45, %82 : vector<8x128xf32>
    %89 = arith.cmpf ogt, %82, %45 : vector<8x128xf32>
    %90 = arith.mulf %8, %87 : vector<8x128xf32>
    %cst_3 = arith.constant 1.000000e+00 : f32
    %91 = vector.broadcast %cst_3 : f32 to vector<8x128xf32>
    %92 = arith.addf %90, %91 : vector<8x128xf32>
    %93 = arith.addf %8, %87 : vector<8x128xf32>
    %94 = arith.select %89, %92, %93 : vector<8x128xi1>, vector<8x128xf32>
    %c18 = arith.constant 18 : index
    %95 = memref.load %arg1[%c18] : memref<45xf32, #tpu.memory_space<smem>>
    %c19 = arith.constant 19 : index
    %96 = memref.load %arg1[%c19] : memref<45xf32, #tpu.memory_space<smem>>
    %c20 = arith.constant 20 : index
    %97 = memref.load %arg1[%c20] : memref<45xf32, #tpu.memory_space<smem>>
    %c21 = arith.constant 21 : index
    %98 = memref.load %arg1[%c21] : memref<45xf32, #tpu.memory_space<smem>>
    %c22 = arith.constant 22 : index
    %99 = memref.load %arg1[%c22] : memref<45xf32, #tpu.memory_space<smem>>
    %c23 = arith.constant 23 : index
    %100 = memref.load %arg1[%c23] : memref<45xf32, #tpu.memory_space<smem>>
    %c24 = arith.constant 24 : index
    %101 = memref.load %arg1[%c24] : memref<45xf32, #tpu.memory_space<smem>>
    %c25 = arith.constant 25 : index
    %102 = memref.load %arg1[%c25] : memref<45xf32, #tpu.memory_space<smem>>
    %c26 = arith.constant 26 : index
    %103 = memref.load %arg1[%c26] : memref<45xf32, #tpu.memory_space<smem>>
    %104 = vector.broadcast %95 : f32 to vector<8x128xf32>
    %105 = arith.mulf %104, %7 : vector<8x128xf32>
    %106 = vector.broadcast %96 : f32 to vector<8x128xf32>
    %107 = arith.mulf %106, %3 : vector<8x128xf32>
    %108 = arith.addf %105, %107 : vector<8x128xf32>
    %109 = vector.broadcast %97 : f32 to vector<8x128xf32>
    %110 = arith.addf %108, %109 : vector<8x128xf32>
    %111 = vector.broadcast %98 : f32 to vector<8x128xf32>
    %112 = arith.mulf %111, %110 : vector<8x128xf32>
    %113 = vector.broadcast %99 : f32 to vector<8x128xf32>
    %114 = arith.addf %112, %113 : vector<8x128xf32>
    %115 = vector.broadcast %100 : f32 to vector<8x128xf32>
    %116 = arith.maximumf %115, %110 : vector<8x128xf32>
    %117 = vector.broadcast %101 : f32 to vector<8x128xf32>
    %118 = arith.minimumf %117, %116 : vector<8x128xf32>
    %119 = vector.broadcast %102 : f32 to vector<8x128xf32>
    %120 = arith.maximumf %119, %114 : vector<8x128xf32>
    %121 = vector.broadcast %103 : f32 to vector<8x128xf32>
    %122 = arith.minimumf %121, %120 : vector<8x128xf32>
    %123 = arith.subf %118, %3 : vector<8x128xf32>
    %124 = arith.mulf %123, %123 : vector<8x128xf32>
    %125 = arith.subf %122, %7 : vector<8x128xf32>
    %126 = arith.mulf %125, %125 : vector<8x128xf32>
    %127 = arith.addf %124, %126 : vector<8x128xf32>
    %cst_4 = arith.constant 1.000000e-10 : f32
    %128 = vector.broadcast %cst_4 : f32 to vector<8x128xf32>
    %129 = arith.addf %127, %128 : vector<8x128xf32>
    %130 = math.rsqrt %129 : vector<8x128xf32>
    %131 = arith.mulf %129, %130 : vector<8x128xf32>
    %132 = arith.subf %131, %88 : vector<8x128xf32>
    %133 = math.absf %132 : vector<8x128xf32>
    %cst_5 = arith.constant 8.000000e+00 : f32
    %134 = vector.broadcast %cst_5 : f32 to vector<8x128xf32>
    %135 = arith.mulf %134, %133 : vector<8x128xf32>
    %136 = math.exp %135 : vector<8x128xf32>
    %137 = arith.maximumf %88, %131 : vector<8x128xf32>
    %138 = arith.cmpf ogt, %131, %88 : vector<8x128xf32>
    %139 = arith.mulf %94, %136 : vector<8x128xf32>
    %cst_6 = arith.constant 1.000000e+00 : f32
    %140 = vector.broadcast %cst_6 : f32 to vector<8x128xf32>
    %141 = arith.addf %139, %140 : vector<8x128xf32>
    %142 = arith.addf %94, %136 : vector<8x128xf32>
    %143 = arith.select %138, %141, %142 : vector<8x128xi1>, vector<8x128xf32>
    %c27 = arith.constant 27 : index
    %144 = memref.load %arg1[%c27] : memref<45xf32, #tpu.memory_space<smem>>
    %c28 = arith.constant 28 : index
    %145 = memref.load %arg1[%c28] : memref<45xf32, #tpu.memory_space<smem>>
    %c29 = arith.constant 29 : index
    %146 = memref.load %arg1[%c29] : memref<45xf32, #tpu.memory_space<smem>>
    %c30 = arith.constant 30 : index
    %147 = memref.load %arg1[%c30] : memref<45xf32, #tpu.memory_space<smem>>
    %c31 = arith.constant 31 : index
    %148 = memref.load %arg1[%c31] : memref<45xf32, #tpu.memory_space<smem>>
    %c32 = arith.constant 32 : index
    %149 = memref.load %arg1[%c32] : memref<45xf32, #tpu.memory_space<smem>>
    %c33 = arith.constant 33 : index
    %150 = memref.load %arg1[%c33] : memref<45xf32, #tpu.memory_space<smem>>
    %c34 = arith.constant 34 : index
    %151 = memref.load %arg1[%c34] : memref<45xf32, #tpu.memory_space<smem>>
    %c35 = arith.constant 35 : index
    %152 = memref.load %arg1[%c35] : memref<45xf32, #tpu.memory_space<smem>>
    %153 = vector.broadcast %144 : f32 to vector<8x128xf32>
    %154 = arith.mulf %153, %7 : vector<8x128xf32>
    %155 = vector.broadcast %145 : f32 to vector<8x128xf32>
    %156 = arith.mulf %155, %3 : vector<8x128xf32>
    %157 = arith.addf %154, %156 : vector<8x128xf32>
    %158 = vector.broadcast %146 : f32 to vector<8x128xf32>
    %159 = arith.addf %157, %158 : vector<8x128xf32>
    %160 = vector.broadcast %147 : f32 to vector<8x128xf32>
    %161 = arith.mulf %160, %159 : vector<8x128xf32>
    %162 = vector.broadcast %148 : f32 to vector<8x128xf32>
    %163 = arith.addf %161, %162 : vector<8x128xf32>
    %164 = vector.broadcast %149 : f32 to vector<8x128xf32>
    %165 = arith.maximumf %164, %159 : vector<8x128xf32>
    %166 = vector.broadcast %150 : f32 to vector<8x128xf32>
    %167 = arith.minimumf %166, %165 : vector<8x128xf32>
    %168 = vector.broadcast %151 : f32 to vector<8x128xf32>
    %169 = arith.maximumf %168, %163 : vector<8x128xf32>
    %170 = vector.broadcast %152 : f32 to vector<8x128xf32>
    %171 = arith.minimumf %170, %169 : vector<8x128xf32>
    %172 = arith.subf %167, %3 : vector<8x128xf32>
    %173 = arith.mulf %172, %172 : vector<8x128xf32>
    %174 = arith.subf %171, %7 : vector<8x128xf32>
    %175 = arith.mulf %174, %174 : vector<8x128xf32>
    %176 = arith.addf %173, %175 : vector<8x128xf32>
    %cst_7 = arith.constant 1.000000e-10 : f32
    %177 = vector.broadcast %cst_7 : f32 to vector<8x128xf32>
    %178 = arith.addf %176, %177 : vector<8x128xf32>
    %179 = math.rsqrt %178 : vector<8x128xf32>
    %180 = arith.mulf %178, %179 : vector<8x128xf32>
    %181 = arith.subf %180, %137 : vector<8x128xf32>
    %182 = math.absf %181 : vector<8x128xf32>
    %cst_8 = arith.constant 8.000000e+00 : f32
    %183 = vector.broadcast %cst_8 : f32 to vector<8x128xf32>
    %184 = arith.mulf %183, %182 : vector<8x128xf32>
    %185 = math.exp %184 : vector<8x128xf32>
    %186 = arith.maximumf %137, %180 : vector<8x128xf32>
    %187 = arith.cmpf ogt, %180, %137 : vector<8x128xf32>
    %188 = arith.mulf %143, %185 : vector<8x128xf32>
    %cst_9 = arith.constant 1.000000e+00 : f32
    %189 = vector.broadcast %cst_9 : f32 to vector<8x128xf32>
    %190 = arith.addf %188, %189 : vector<8x128xf32>
    %191 = arith.addf %143, %185 : vector<8x128xf32>
    %192 = arith.select %187, %190, %191 : vector<8x128xi1>, vector<8x128xf32>
    %c36 = arith.constant 36 : index
    %193 = memref.load %arg1[%c36] : memref<45xf32, #tpu.memory_space<smem>>
    %c37 = arith.constant 37 : index
    %194 = memref.load %arg1[%c37] : memref<45xf32, #tpu.memory_space<smem>>
    %c38 = arith.constant 38 : index
    %195 = memref.load %arg1[%c38] : memref<45xf32, #tpu.memory_space<smem>>
    %c39 = arith.constant 39 : index
    %196 = memref.load %arg1[%c39] : memref<45xf32, #tpu.memory_space<smem>>
    %c40 = arith.constant 40 : index
    %197 = memref.load %arg1[%c40] : memref<45xf32, #tpu.memory_space<smem>>
    %c41 = arith.constant 41 : index
    %198 = memref.load %arg1[%c41] : memref<45xf32, #tpu.memory_space<smem>>
    %c42 = arith.constant 42 : index
    %199 = memref.load %arg1[%c42] : memref<45xf32, #tpu.memory_space<smem>>
    %c43 = arith.constant 43 : index
    %200 = memref.load %arg1[%c43] : memref<45xf32, #tpu.memory_space<smem>>
    %c44 = arith.constant 44 : index
    %201 = memref.load %arg1[%c44] : memref<45xf32, #tpu.memory_space<smem>>
    %202 = vector.broadcast %193 : f32 to vector<8x128xf32>
    %203 = arith.mulf %202, %7 : vector<8x128xf32>
    %204 = vector.broadcast %194 : f32 to vector<8x128xf32>
    %205 = arith.mulf %204, %3 : vector<8x128xf32>
    %206 = arith.addf %203, %205 : vector<8x128xf32>
    %207 = vector.broadcast %195 : f32 to vector<8x128xf32>
    %208 = arith.addf %206, %207 : vector<8x128xf32>
    %209 = vector.broadcast %196 : f32 to vector<8x128xf32>
    %210 = arith.mulf %209, %208 : vector<8x128xf32>
    %211 = vector.broadcast %197 : f32 to vector<8x128xf32>
    %212 = arith.addf %210, %211 : vector<8x128xf32>
    %213 = vector.broadcast %198 : f32 to vector<8x128xf32>
    %214 = arith.maximumf %213, %208 : vector<8x128xf32>
    %215 = vector.broadcast %199 : f32 to vector<8x128xf32>
    %216 = arith.minimumf %215, %214 : vector<8x128xf32>
    %217 = vector.broadcast %200 : f32 to vector<8x128xf32>
    %218 = arith.maximumf %217, %212 : vector<8x128xf32>
    %219 = vector.broadcast %201 : f32 to vector<8x128xf32>
    %220 = arith.minimumf %219, %218 : vector<8x128xf32>
    %221 = arith.subf %216, %3 : vector<8x128xf32>
    %222 = arith.mulf %221, %221 : vector<8x128xf32>
    %223 = arith.subf %220, %7 : vector<8x128xf32>
    %224 = arith.mulf %223, %223 : vector<8x128xf32>
    %225 = arith.addf %222, %224 : vector<8x128xf32>
    %cst_10 = arith.constant 1.000000e-10 : f32
    %226 = vector.broadcast %cst_10 : f32 to vector<8x128xf32>
    %227 = arith.addf %225, %226 : vector<8x128xf32>
    %228 = math.rsqrt %227 : vector<8x128xf32>
    %229 = arith.mulf %227, %228 : vector<8x128xf32>
    %230 = arith.subf %229, %186 : vector<8x128xf32>
    %231 = math.absf %230 : vector<8x128xf32>
    %cst_11 = arith.constant 8.000000e+00 : f32
    %232 = vector.broadcast %cst_11 : f32 to vector<8x128xf32>
    %233 = arith.mulf %232, %231 : vector<8x128xf32>
    %234 = math.exp %233 : vector<8x128xf32>
    %235 = arith.maximumf %186, %229 : vector<8x128xf32>
    %236 = arith.cmpf ogt, %229, %186 : vector<8x128xf32>
    %237 = arith.mulf %192, %234 : vector<8x128xf32>
    %cst_12 = arith.constant 1.000000e+00 : f32
    %238 = vector.broadcast %cst_12 : f32 to vector<8x128xf32>
    %239 = arith.addf %237, %238 : vector<8x128xf32>
    %240 = arith.addf %192, %234 : vector<8x128xf32>
    %241 = arith.select %236, %239, %240 : vector<8x128xi1>, vector<8x128xf32>
    %c0_13 = arith.constant 0 : index
    %242 = memref.load %arg2[%c0_13] : memref<3xf32, #tpu.memory_space<smem>>
    %c1_14 = arith.constant 1 : index
    %243 = memref.load %arg2[%c1_14] : memref<3xf32, #tpu.memory_space<smem>>
    %c2_15 = arith.constant 2 : index
    %244 = memref.load %arg2[%c2_15] : memref<3xf32, #tpu.memory_space<smem>>
    %245 = vector.broadcast %243 : f32 to vector<8x128xf32>
    %246 = arith.maximumf %245, %7 : vector<8x128xf32>
    %247 = vector.broadcast %244 : f32 to vector<8x128xf32>
    %248 = arith.minimumf %247, %246 : vector<8x128xf32>
    %249 = vector.broadcast %242 : f32 to vector<8x128xf32>
    %250 = arith.subf %249, %3 : vector<8x128xf32>
    %251 = arith.mulf %250, %250 : vector<8x128xf32>
    %252 = arith.subf %248, %7 : vector<8x128xf32>
    %253 = arith.mulf %252, %252 : vector<8x128xf32>
    %254 = arith.addf %251, %253 : vector<8x128xf32>
    %cst_16 = arith.constant 1.000000e-10 : f32
    %255 = vector.broadcast %cst_16 : f32 to vector<8x128xf32>
    %256 = arith.addf %254, %255 : vector<8x128xf32>
    %257 = math.rsqrt %256 : vector<8x128xf32>
    %258 = arith.mulf %256, %257 : vector<8x128xf32>
    %259 = arith.subf %258, %235 : vector<8x128xf32>
    %260 = math.absf %259 : vector<8x128xf32>
    %cst_17 = arith.constant 8.000000e+00 : f32
    %261 = vector.broadcast %cst_17 : f32 to vector<8x128xf32>
    %262 = arith.mulf %261, %260 : vector<8x128xf32>
    %263 = math.exp %262 : vector<8x128xf32>
    %264 = arith.maximumf %235, %258 : vector<8x128xf32>
    %265 = arith.cmpf ogt, %258, %235 : vector<8x128xf32>
    %266 = arith.mulf %241, %263 : vector<8x128xf32>
    %cst_18 = arith.constant 1.000000e+00 : f32
    %267 = vector.broadcast %cst_18 : f32 to vector<8x128xf32>
    %268 = arith.addf %266, %267 : vector<8x128xf32>
    %269 = arith.addf %241, %263 : vector<8x128xf32>
    %270 = arith.select %265, %268, %269 : vector<8x128xi1>, vector<8x128xf32>
    %cst_19 = arith.constant 8.000000e+00 : f32
    %271 = vector.broadcast %cst_19 : f32 to vector<8x128xf32>
    %272 = arith.mulf %271, %264 : vector<8x128xf32>
    %273 = math.log %270 : vector<8x128xf32>
    %274 = arith.subf %272, %273 : vector<8x128xf32>
    %cst_20 = arith.constant 1.250000e-01 : f32
    %275 = vector.broadcast %cst_20 : f32 to vector<8x128xf32>
    %276 = arith.mulf %274, %275 : vector<8x128xf32>
    %c0_21 = arith.constant 0 : index
    %c0_22 = arith.constant 0 : index
    %277 = vector.load %arg3[%c0_21, %c0_22] : memref<8x128xf32, #tpu.memory_space<vmem>>, vector<8x128xf32>
    tpu.vector_store %arg3[%c0_21, %c0_22], %276 {strides = array<i32>} : memref<8x128xf32, #tpu.memory_space<vmem>>, vector<8x128xf32>,
    return
  }
  func.func @transform_0(%arg0: i32) -> i32 {
    %c0_i32 = arith.constant 0 : i32
    %c0_i32_0 = arith.constant 0 : i32
    return %c0_i32 : i32
  }
  func.func @transform_1(%arg0: i32) -> i32 {
    %c0_i32 = arith.constant 0 : i32
    %c0_i32_0 = arith.constant 0 : i32
    return %c0_i32 : i32
  }
  func.func @transform_2(%arg0: i32) -> (i32, i32) {
    %c0_i32 = arith.constant 0 : i32
    %c0_i32_0 = arith.constant 0 : i32
    return %arg0, %c0_i32 : i32, i32
  }
}

</mosaic_0001>

<llo_original>
// kernel: render.1
$region0: #{render.1}
  #allocation0 [shape = 'u32[]', space=smem, size = 0x4, offset = 0x4, fixed_abs, tag = 'smem constant byte address 0x4 - core index']
  #allocation1 [shape = 'u32[72,128]{1,0:T(1,128)}', space=vmem, size = 0x9000, scoped, tag = 'internal scratch']
  %s0 = inlined_call_operand.hbm [shape: f32[45], index: 0, kind: input, shape index: {}]
  %s1 = inlined_call_operand.hbm [shape: f32[3], index: 1, kind: input, shape index: {}]
  %s2 = inlined_call_operand.vmem [shape: f32[16,128], index: 2, kind: output, shape index: {}]
  %s3 = sld [smem:[#allocation0]]
  $region49: #{render.1} parent=0
    _
  %s5 = ssub.s32 1, %s3
  %s6 = scalar_select 0, %s5, %s3
  $region1: #{render.1} parent=0
    #allocation2 [shape = 'u8[512]{0}', space=smem, size = 0x200, scoped, tag = 'input window, operand 0, single buffered']
    #allocation3 [shape = 's32[2]{0}', space=sflag, size = 0x8, scoped, tag = 'scoped memory for render.1']
    #allocation4 [shape = 'u8[512]{0}', space=smem, size = 0x200, scoped, tag = 'input window, operand 1, single buffered']
    #allocation5 [shape = 's32[1]{0}', space=sflag, size = 0x4, scoped, tag = 'scoped memory for render.1']
    %7 = vsyncpa [#allocation3], 0
    %8 = vsyncpa [#allocation5], 0
    loop: start=0, step=1, limit=4
    $region2: #{render.1} parent=1 // loop_pre_header
      _
    $region3: #{render.1} parent=1 // loop_header
      %s10 = sphi 0, %s14
      %p11 = scmp.ge.s32.totalorder %s10, 4
      %s18 = sphi 0, %s18
      %s20 = sphi 0, %s18
      %s21 = sphi 0, %s20
      %s35 = sphi 0, %s21
      %s39 = sphi 0, %s39
      %s41 = sphi 0, %s39
      %s42 = sphi 0, %s41
      %s56 = sphi 0, %s42
      %s62 = sphi 0, %s64
      %s65 = sphi 0, %s62
      %s66 = sphi 0, %s65
      %s82 = sphi 0, %s66
    $region4: #{render.1} parent=1 // loop_header_branch
      %13 = sbr.rel (%p11) target = $region8
    $region5: #{render.1} parent=1 // loop_body
      %s15 = ssub.s32 %s10, 1
      %s16 = ssub.s32 %s10, 2
      %s17 = sadd.s32 %s10, 1
      %s19 = sadd.s32 %s18, 1
      %p22 = scmp.eq.s32.totalorder %s10, 1
      %p23 = scmp.ne.s32.totalorder %s18, %s20
      %p24 = scmp.eq.s32.totalorder %s10, 0
      %p25 = por %p23, %p24
      %p26 = scmp.ne.s32.totalorder %s18, %s20
      %p27 = scmp.eq.s32.totalorder %s15, 1
      %p28 = por %p26, %p27
      %p29 = scmp.ne.s32.totalorder %s20, %s21
      %p30 = scmp.eq.s32.totalorder %s15, 0
      %p31 = por %p29, %p30
      %p32 = scmp.ne.s32.totalorder %s20, %s21
      %p33 = scmp.eq.s32.totalorder %s16, 1
      %p34 = por %p32, %p33
      %p36 = scmp.ne.s32.totalorder %s21, %s35
      %p37 = scmp.eq.s32.totalorder %s16, 0
      %p38 = por %p36, %p37
      %s40 = sadd.s32 %s39, 1
      %p43 = scmp.eq.s32.totalorder %s10, 1
      %p44 = scmp.ne.s32.totalorder %s39, %s41
      %p45 = scmp.eq.s32.totalorder %s10, 0
      %p46 = por %p44, %p45
      %p47 = scmp.ne.s32.totalorder %s39, %s41
      %p48 = scmp.eq.s32.totalorder %s15, 1
      %p49 = por %p47, %p48
      %p50 = scmp.ne.s32.totalorder %s41, %s42
      %p51 = scmp.eq.s32.totalorder %s15, 0
      %p52 = por %p50, %p51
      %p53 = scmp.ne.s32.totalorder %s41, %s42
      %p54 = scmp.eq.s32.totalorder %s16, 1
      %p55 = por %p53, %p54
      %p57 = scmp.ne.s32.totalorder %s42, %s56
      %p58 = scmp.eq.s32.totalorder %s16, 0
      %p59 = por %p57, %p58
      %s60 = ssub.s32 %s10, %s17
      %p61 = scmp.eq.s32.totalorder %s60, 0
      %s63 = sadd.s32 %s62, 1
      %s64 = scalar_select %p61, %s62, %s63
      %p67 = pneg %p61
      %p68 = scmp.eq.s32.totalorder %s10, 1
      %p69 = por %p67, %p68
      %p70 = scmp.ne.s32.totalorder %s62, %s65
      %p71 = scmp.eq.s32.totalorder %s10, 0
      %p72 = por %p70, %p71
      %p73 = scmp.ne.s32.totalorder %s62, %s65
      %p74 = scmp.eq.s32.totalorder %s15, 1
      %p75 = por %p73, %p74
      %p76 = scmp.ne.s32.totalorder %s65, %s66
      %p77 = scmp.eq.s32.totalorder %s15, 0
      %p78 = por %p76, %p77
      %p79 = scmp.ne.s32.totalorder %s65, %s66
      %p80 = scmp.eq.s32.totalorder %s16, 1
      %p81 = por %p79, %p80
      %p83 = scmp.ne.s32.totalorder %s66, %s82
      %p84 = scmp.eq.s32.totalorder %s16, 0
      %p85 = por %p83, %p84
      %p86 = scmp.le.s32.totalorder 1, %s10
      %p87 = scmp.lt.s32.totalorder %s10, 3
      %p88 = pnand %p86, %p87
      %p89 = pneg %p88
      // Predicated region
      $region9: #{render.1} parent=5 // pred_check
        _
      $region10: #{render.1} parent=5 // pred_check_branch
        %91 = sbr.rel (%p88) target = $region12
      $region11: #{render.1} parent=5 // pred_region
        %s92 = ssub.s32 %s10, 1
        // Predicated region
        $region13: #{render.1} parent=11 // pred_check
          %p93 = pneg %p31
        $region14: #{render.1} parent=11 // pred_check_branch
          %95 = sbr.rel (%p93) target = $region16
        $region15: #{render.1} parent=11 // pred_region
          %97 = vsyncadd [#allocation3], 0
          %s99 = sshll.u32 %s0, 4
          %s100 = int_to_ptr.hbm [resolvable:$true] %s99
          %102 = dma.hbm_to_smem %s100, 16, [#allocation2], [#allocation3]
        $region16: #{render.1} parent=11 // pred_fallthru
          _
        // Predicated region
        $region17: #{render.1} parent=11 // pred_check
          %p103 = pneg %p52
        $region18: #{render.1} parent=11 // pred_check_branch
          %105 = sbr.rel (%p103) target = $region20
        $region19: #{render.1} parent=11 // pred_region
          %107 = vsyncadd [#allocation5], 0
          %s109 = sshll.u32 %s1, 4
          %s110 = int_to_ptr.hbm [resolvable:$true] %s109
          %112 = dma.hbm_to_smem %s110, 16, [#allocation4], [#allocation5]
        $region20: #{render.1} parent=11 // pred_fallthru
          _
      $region12: #{render.1} parent=5 // pred_fallthru
        _
      %p113 = scmp.lt.s32.totalorder %s10, 2
      // Predicated region
      $region21: #{render.1} parent=5 // pred_check
        %p114 = pneg %p113
      $region22: #{render.1} parent=5 // pred_check_branch
        %116 = sbr.rel (%p114) target = $region24
      $region23: #{render.1} parent=5 // pred_region
        _
      $region24: #{render.1} parent=5 // pred_fallthru
        _
      %p117 = scmp.le.s32.totalorder 1, %s10
      %p118 = scmp.lt.s32.totalorder %s10, 3
      %p119 = pnand %p117, %p118
      %p120 = pneg %p119
      // Predicated region
      $region25: #{render.1} parent=5 // pred_check
        _
      $region26: #{render.1} parent=5 // pred_check_branch
        %122 = sbr.rel (%p119) target = $region28
      $region27: #{render.1} parent=5 // pred_region
        %s123 = ssub.s32 %s10, 1
        // Predicated region
        $region29: #{render.1} parent=27 // pred_check
          %p124 = pneg %p31
        $region30: #{render.1} parent=27 // pred_check_branch
          %126 = sbr.rel (%p124) target = $region32
        $region31: #{render.1} parent=27 // pred_region
          %128 = dma.done [#allocation3], 16
        $region32: #{render.1} parent=27 // pred_fallthru
          _
        // Predicated region
        $region33: #{render.1} parent=27 // pred_check
          %p129 = pneg %p52
        $region34: #{render.1} parent=27 // pred_check_branch
          %131 = sbr.rel (%p129) target = $region36
        $region35: #{render.1} parent=27 // pred_region
          %133 = dma.done [#allocation5], 16
        $region36: #{render.1} parent=27 // pred_fallthru
          _
        %134 = sfence
        %p135 = pneg %p31
        %p136 = pneg %p28
        %p137 = pneg %p52
        %p138 = pneg %p49
        %p139 = pneg %p78
        %p140 = pneg %p75
        %p141 = scmp.lt.s32.totalorder %s15, 1
        %s142 = scalar_select %p141, %s15, 1
        %s143 = smul.addr %s142, 8
        %s144 = scalar_lea.vmem %s2, %s143
        %p145 = scmp.lt.s32.totalorder %s15, 1
        %s146 = scalar_select %p145, %s15, 1
        %s147 = smul.addr %s146, 8
        %s148 = scalar_lea.vmem %s2, %s147
        %s149 = smul.u32 %s15, 8
        %s150 = scvt.s32.f32 %s149
        %v151 = vlaneseq
        %v152 = vand.u32 %v151, 127
        %v153 = vcvt.s32.f32 %v152
        %v154 = vlaneseq
        %v155 = vshrl.u32 %v154, 7
        %v156 = vcvt.s32.f32 %v155
        %v157 = vstv %s150
        %v158 = vadd.f32 %v156, %v157
        %s159 = sld [smem:[#allocation2]]
        %s160 = sld [smem:[#allocation2 + $0x1]]
        %s161 = sld [smem:[#allocation2 + $0x2]]
        %s162 = sld [smem:[#allocation2 + $0x3]]
        %s163 = sld [smem:[#allocation2 + $0x4]]
        %s164 = sld [smem:[#allocation2 + $0x5]]
        %s165 = sld [smem:[#allocation2 + $0x6]]
        %s166 = sld [smem:[#allocation2 + $0x7]]
        %s167 = sld [smem:[#allocation2 + $0x8]]
        %v168 = vstv %s159
        %v169 = vmul.f32 %v168, %v158
        %v170 = vstv %s160
        %v171 = vmul.f32 %v170, %v153
        %v172 = vadd.f32 %v169, %v171
        %v173 = vstv %s161
        %v174 = vadd.f32 %v172, %v173
        %v175 = vstv %s162
        %v176 = vmul.f32 %v175, %v174
        %v177 = vstv %s163
        %v178 = vadd.f32 %v176, %v177
        %v179 = vstv %s164
        %v180 = vmax.f32 %v179, %v174
        %v181 = vstv %s165
        %v182 = vmin.f32 %v181, %v180
        %v183 = vstv %s166
        %v184 = vmax.f32 %v183, %v178
        %v185 = vstv %s167
        %v186 = vmin.f32 %v185, %v184
        %v187 = vsub.f32 %v182, %v153
        %v188 = vmul.f32 %v187, %v187
        %v189 = vsub.f32 %v186, %v158
        %v190 = vmul.f32 %v189, %v189
        %v191 = vadd.f32 %v188, %v190
        %v192 = vadd.f32 %v191, 1e-10
        %v193 = vrsqrt.pop %v192
        %v194 = vmul.f32 %v193, %v192
        %v195 = vmul.f32 %v194, %v193
        %v196 = vmul.f32 0.5, %v195
        %v197 = vsub.f32 1.5, %v196
        %v198 = vmul.f32 %v193, %v197
        %vm199 = vweird.f32 %v192
        %vm200 = vweird.f32 %v193
        %vm201 = vmor %vm199, %vm200
        %v202 = vsel %vm201, %v193, %v198
        %v203 = vmul.f32 %v192, %v202
        %s204 = sld [smem:[#allocation2 + $0x9]]
        %s205 = sld [smem:[#allocation2 + $0xa]]
        %s206 = sld [smem:[#allocation2 + $0xb]]
        %s207 = sld [smem:[#allocation2 + $0xc]]
        %s208 = sld [smem:[#allocation2 + $0xd]]
        %s209 = sld [smem:[#allocation2 + $0xe]]
        %s210 = sld [smem:[#allocation2 + $0xf]]
        %s211 = sld [smem:[#allocation2 + $0x10]]
        %s212 = sld [smem:[#allocation2 + $0x11]]
        %v213 = vstv %s204
        %v214 = vmul.f32 %v213, %v158
        %v215 = vstv %s205
        %v216 = vmul.f32 %v215, %v153
        %v217 = vadd.f32 %v214, %v216
        %v218 = vstv %s206
        %v219 = vadd.f32 %v217, %v218
        %v220 = vstv %s207
        %v221 = vmul.f32 %v220, %v219
        %v222 = vstv %s208
        %v223 = vadd.f32 %v221, %v222
        %v224 = vstv %s209
        %v225 = vmax.f32 %v224, %v219
        %v226 = vstv %s210
        %v227 = vmin.f32 %v226, %v225
        %v228 = vstv %s211
        %v229 = vmax.f32 %v228, %v223
        %v230 = vstv %s212
        %v231 = vmin.f32 %v230, %v229
        %v232 = vsub.f32 %v227, %v153
        %v233 = vmul.f32 %v232, %v232
        %v234 = vsub.f32 %v231, %v158
        %v235 = vmul.f32 %v234, %v234
        %v236 = vadd.f32 %v233, %v235
        %v237 = vadd.f32 %v236, 1e-10
        %v238 = vrsqrt.pop %v237
        %v239 = vmul.f32 %v238, %v237
        %v240 = vmul.f32 %v239, %v238
        %v241 = vmul.f32 0.5, %v240
        %v242 = vsub.f32 1.5, %v241
        %v243 = vmul.f32 %v238, %v242
        %vm244 = vweird.f32 %v237
        %vm245 = vweird.f32 %v238
        %vm246 = vmor %vm244, %vm245
        %v247 = vsel %vm246, %v238, %v243
        %v248 = vmul.f32 %v237, %v247
        %v249 = vsub.f32 %v248, %v203
        %v250 = vand.u32 2147483647, %v249
        %v251 = vmul.f32 %v250, 8.0
        %v252 = vmul.f32 %v251, 1.442695
        %v253 = vpow.pop %v252
        %v254 = vmax.f32 %v203, %v248
        %v255 = vadd.f32 %v253, 1.0
        %s256 = sld [smem:[#allocation2 + $0x12]]
        %s257 = sld [smem:[#allocation2 + $0x13]]
        %s258 = sld [smem:[#allocation2 + $0x14]]
        %s259 = sld [smem:[#allocation2 + $0x15]]
        %s260 = sld [smem:[#allocation2 + $0x16]]
        %s261 = sld [smem:[#allocation2 + $0x17]]
        %s262 = sld [smem:[#allocation2 + $0x18]]
        %s263 = sld [smem:[#allocation2 + $0x19]]
        %s264 = sld [smem:[#allocation2 + $0x1a]]
        %v265 = vstv %s256
        %v266 = vmul.f32 %v265, %v158
        %v267 = vstv %s257
        %v268 = vmul.f32 %v267, %v153
        %v269 = vadd.f32 %v266, %v268
        %v270 = vstv %s258
        %v271 = vadd.f32 %v269, %v270
        %v272 = vstv %s259
        %v273 = vmul.f32 %v272, %v271
        %v274 = vstv %s260
        %v275 = vadd.f32 %v273, %v274
        %v276 = vstv %s261
        %v277 = vmax.f32 %v276, %v271
        %v278 = vstv %s262
        %v279 = vmin.f32 %v278, %v277
        %v280 = vstv %s263
        %v281 = vmax.f32 %v280, %v275
        %v282 = vstv %s264
        %v283 = vmin.f32 %v282, %v281
        %v284 = vsub.f32 %v279, %v153
        %v285 = vmul.f32 %v284, %v284
        %v286 = vsub.f32 %v283, %v158
        %v287 = vmul.f32 %v286, %v286
        %v288 = vadd.f32 %v285, %v287
        %v289 = vadd.f32 %v288, 1e-10
        %v290 = vrsqrt.pop %v289
        %v291 = vmul.f32 %v290, %v289
        %v292 = vmul.f32 %v291, %v290
        %v293 = vmul.f32 0.5, %v292
        %v294 = vsub.f32 1.5, %v293
        %v295 = vmul.f32 %v290, %v294
        %vm296 = vweird.f32 %v289
        %vm297 = vweird.f32 %v290
        %vm298 = vmor %vm296, %vm297
        %v299 = vsel %vm298, %v290, %v295
        %v300 = vmul.f32 %v289, %v299
        %v301 = vsub.f32 %v300, %v254
        %v302 = vand.u32 2147483647, %v301
        %v303 = vmul.f32 %v302, 8.0
        %v304 = vmul.f32 %v303, 1.442695
        %v305 = vpow.pop %v304
        %v306 = vmax.f32 %v254, %v300
        %vm307 = vcmp.gt.f32.partialorder %v300, %v254
        %v308 = vmul.f32 %v255, %v305
        %v309 = vadd.f32 %v308, 1.0
        %v310 = vadd.f32 %v255, %v305
        %v311 = vsel %vm307, %v309, %v310
        %s312 = sld [smem:[#allocation2 + $0x1b]]
        %s313 = sld [smem:[#allocation2 + $0x1c]]
        %s314 = sld [smem:[#allocation2 + $0x1d]]
        %s315 = sld [smem:[#allocation2 + $0x1e]]
        %s316 = sld [smem:[#allocation2 + $0x1f]]
        %s317 = sld [smem:[#allocation2 + $0x20]]
        %s318 = sld [smem:[#allocation2 + $0x21]]
        %s319 = sld [smem:[#allocation2 + $0x22]]
        %s320 = sld [smem:[#allocation2 + $0x23]]
        %v321 = vstv %s312
        %v322 = vmul.f32 %v321, %v158
        %v323 = vstv %s313
        %v324 = vmul.f32 %v323, %v153
        %v325 = vadd.f32 %v322, %v324
        %v326 = vstv %s314
        %v327 = vadd.f32 %v325, %v326
        %v328 = vstv %s315
        %v329 = vmul.f32 %v328, %v327
        %v330 = vstv %s316
        %v331 = vadd.f32 %v329, %v330
        %v332 = vstv %s317
        %v333 = vmax.f32 %v332, %v327
        %v334 = vstv %s318
        %v335 = vmin.f32 %v334, %v333
        %v336 = vstv %s319
        %v337 = vmax.f32 %v336, %v331
        %v338 = vstv %s320
        %v339 = vmin.f32 %v338, %v337
        %v340 = vsub.f32 %v335, %v153
        %v341 = vmul.f32 %v340, %v340
        %v342 = vsub.f32 %v339, %v158
        %v343 = vmul.f32 %v342, %v342
        %v344 = vadd.f32 %v341, %v343
        %v345 = vadd.f32 %v344, 1e-10
        %v346 = vrsqrt.pop %v345
        %v347 = vmul.f32 %v346, %v345
        %v348 = vmul.f32 %v347, %v346
        %v349 = vmul.f32 0.5, %v348
        %v350 = vsub.f32 1.5, %v349
        %v351 = vmul.f32 %v346, %v350
        %vm352 = vweird.f32 %v345
        %vm353 = vweird.f32 %v346
        %vm354 = vmor %vm352, %vm353
        %v355 = vsel %vm354, %v346, %v351
        %v356 = vmul.f32 %v345, %v355
        %v357 = vsub.f32 %v356, %v306
        %v358 = vand.u32 2147483647, %v357
        %v359 = vmul.f32 %v358, 8.0
        %v360 = vmul.f32 %v359, 1.442695
        %v361 = vpow.pop %v360
        %v362 = vmax.f32 %v306, %v356
        %vm363 = vcmp.gt.f32.partialorder %v356, %v306
        %v364 = vmul.f32 %v311, %v361
        %v365 = vadd.f32 %v364, 1.0
        %v366 = vadd.f32 %v311, %v361
        %v367 = vsel %vm363, %v365, %v366
        %s368 = sld [smem:[#allocation2 + $0x24]]
        %s369 = sld [smem:[#allocation2 + $0x25]]
        %s370 = sld [smem:[#allocation2 + $0x26]]
        %s371 = sld [smem:[#allocation2 + $0x27]]
        %s372 = sld [smem:[#allocation2 + $0x28]]
        %s373 = sld [smem:[#allocation2 + $0x29]]
        %s374 = sld [smem:[#allocation2 + $0x2a]]
        %s375 = sld [smem:[#allocation2 + $0x2b]]
        %s376 = sld [smem:[#allocation2 + $0x2c]]
        %v377 = vstv %s368
        %v378 = vmul.f32 %v377, %v158
        %v379 = vstv %s369
        %v380 = vmul.f32 %v379, %v153
        %v381 = vadd.f32 %v378, %v380
        %v382 = vstv %s370
        %v383 = vadd.f32 %v381, %v382
        %v384 = vstv %s371
        %v385 = vmul.f32 %v384, %v383
        %v386 = vstv %s372
        %v387 = vadd.f32 %v385, %v386
        %v388 = vstv %s373
        %v389 = vmax.f32 %v388, %v383
        %v390 = vstv %s374
        %v391 = vmin.f32 %v390, %v389
        %v392 = vstv %s375
        %v393 = vmax.f32 %v392, %v387
        %v394 = vstv %s376
        %v395 = vmin.f32 %v394, %v393
        %v396 = vsub.f32 %v391, %v153
        %v397 = vmul.f32 %v396, %v396
        %v398 = vsub.f32 %v395, %v158
        %v399 = vmul.f32 %v398, %v398
        %v400 = vadd.f32 %v397, %v399
        %v401 = vadd.f32 %v400, 1e-10
        %v402 = vrsqrt.pop %v401
        %v403 = vmul.f32 %v402, %v401
        %v404 = vmul.f32 %v403, %v402
        %v405 = vmul.f32 0.5, %v404
        %v406 = vsub.f32 1.5, %v405
        %v407 = vmul.f32 %v402, %v406
        %vm408 = vweird.f32 %v401
        %vm409 = vweird.f32 %v402
        %vm410 = vmor %vm408, %vm409
        %v411 = vsel %vm410, %v402, %v407
        %v412 = vmul.f32 %v401, %v411
        %v413 = vsub.f32 %v412, %v362
        %v414 = vand.u32 2147483647, %v413
        %v415 = vmul.f32 %v414, 8.0
        %v416 = vmul.f32 %v415, 1.442695
        %v417 = vpow.pop %v416
        %v418 = vmax.f32 %v362, %v412
        %vm419 = vcmp.gt.f32.partialorder %v412, %v362
        %v420 = vmul.f32 %v367, %v417
        %v421 = vadd.f32 %v420, 1.0
        %v422 = vadd.f32 %v367, %v417
        %v423 = vsel %vm419, %v421, %v422
        %s424 = sld [smem:[#allocation4]]
        %s425 = sld [smem:[#allocation4 + $0x1]]
        %s426 = sld [smem:[#allocation4 + $0x2]]
        %v427 = vstv %s425
        %v428 = vmax.f32 %v427, %v158
        %v429 = vstv %s426
        %v430 = vmin.f32 %v429, %v428
        %v431 = vstv %s424
        %v432 = vsub.f32 %v431, %v153
        %v433 = vmul.f32 %v432, %v432
        %v434 = vsub.f32 %v430, %v158
        %v435 = vmul.f32 %v434, %v434
        %v436 = vadd.f32 %v433, %v435
        %v437 = vadd.f32 %v436, 1e-10
        %v438 = vrsqrt.pop %v437
        %v439 = vmul.f32 %v438, %v437
        %v440 = vmul.f32 %v439, %v438
        %v441 = vmul.f32 0.5, %v440
        %v442 = vsub.f32 1.5, %v441
        %v443 = vmul.f32 %v438, %v442
        %vm444 = vweird.f32 %v437
        %vm445 = vweird.f32 %v438
        %vm446 = vmor %vm444, %vm445
        %v447 = vsel %vm446, %v438, %v443
        %v448 = vmul.f32 %v437, %v447
        %v449 = vsub.f32 %v448, %v418
        %v450 = vand.u32 2147483647, %v449
        %v451 = vmul.f32 %v450, 8.0
        %v452 = vmul.f32 %v451, 1.442695
        %v453 = vpow.pop %v452
        %v454 = vmax.f32 %v418, %v448
        %vm455 = vcmp.gt.f32.partialorder %v448, %v418
        %v456 = vmul.f32 %v423, %v453
        %v457 = vadd.f32 %v456, 1.0
        %v458 = vadd.f32 %v423, %v453
        %v459 = vsel %vm455, %v457, %v458
        %v460 = vmul.f32 %v454, 8.0
        %v461 = vlog2.pop %v459
        %v462 = vmul.f32 %v461, 0.6931472
        %v463 = vsub.f32 %v460, %v462
        %v464 = vmul.f32 %v463, 0.125
        %465 = vst [vmem:[%s148] sm:$0xff] %v464
        %p466 = scmp.lt.s32.totalorder %s15, 1
        %s467 = scalar_select %p466, %s15, 1
        %s468 = smul.addr %s467, 8
        %s469 = scalar_lea.vmem %s2, %s468
        // Predicated region
        $region37: #{render.1} parent=27 // pred_check
          %p470 = pneg %p75
        $region38: #{render.1} parent=27 // pred_check_branch
          %472 = sbr.rel (%p470) target = $region40
        $region39: #{render.1} parent=27 // pred_region
          _
        $region40: #{render.1} parent=27 // pred_fallthru
          _
      $region28: #{render.1} parent=5 // pred_fallthru
        _
      %p473 = scmp.le.s32.totalorder 2, %s10
      // Predicated region
      $region41: #{render.1} parent=5 // pred_check
        %p474 = pneg %p473
      $region42: #{render.1} parent=5 // pred_check_branch
        %476 = sbr.rel (%p474) target = $region44
      $region43: #{render.1} parent=5 // pred_region
        %s477 = ssub.s32 %s10, 2
        // Predicated region
        $region45: #{render.1} parent=43 // pred_check
          %p478 = pneg %p81
        $region46: #{render.1} parent=43 // pred_check_branch
          %480 = sbr.rel (%p478) target = $region48
        $region47: #{render.1} parent=43 // pred_region
          %p481 = scmp.lt.s32.totalorder %s16, 1
          %s482 = scalar_select %p481, %s16, 1
          %s483 = smul.addr %s482, 8
          %s484 = scalar_lea.vmem %s2, %s483
        $region48: #{render.1} parent=43 // pred_fallthru
          _
      $region44: #{render.1} parent=5 // pred_fallthru
        _
    $region6: #{render.1} parent=1 // loop_footer
      %s14 = sadd.s32 1, %s10
    $region7: #{render.1} parent=1 // loop_footer_branch
      %9 = sbr.rel target = $region3
    $region8: #{render.1} parent=1 // loop_exit
      _
    %485 = vsyncpa [#allocation3], 1
    %s486 = scalar_lea.sflag [#allocation3], 1
    %487 = vsyncpa %s486, 1
    %488 = vsyncpa [#allocation5], 1

</llo_original>
